<compile_context>
chip_gen: v7x
topology: tpu7x:2x2x1
jax: 0.10.0
libtpu: 0.0.40
codegen_flags: <defaults>
</compile_context>

<pallas_src>
import jax
import jax.numpy as jnp
from jax.experimental import pallas as pl
from jax.experimental.pallas import tpu as pltpu

K = 3                # kernel size (module default)
NEG_SLOPE = 0.2      # LeakyReLU slope


def _tconv_lrelu_kernel(x_ref, w_ref, b_ref, o_ref, lhs_ref):
    """One block of Bt images per grid step.

    x_ref   : (Bt, Cin, H+2, W)   y-halo-padded NCHW input (bf16)
    w_ref   : (K*Cin*W, W*Cout)   Toeplitz-expanded, spectral-normalized weight (bf16)
    b_ref   : (1, W*Cout)         bias tiled over W (f32)
    o_ref   : (Bt, H, W*Cout)     lane-dense output slab
    lhs_ref : (Bt*H, K*Cin*W)     im2col LHS scratch (bf16)
    """
    Bt, Cin, Hp, W = x_ref.shape
    H = Hp - 2

    # Build the im2col LHS: for each image / y-tap / channel, copy the shifted
    # (H, W) row-view of the pre-padded input into its lane block.  Column order
    # (dy, ci, xi) matches the row order of the Toeplitz weight.
    for b in range(Bt):
        for dy in range(K):
            for ci in range(Cin):
                col = (dy * Cin + ci) * W
                lhs_ref[b * H:(b + 1) * H, col:col + W] = x_ref[b, ci, dy:dy + H, :]

    # One fused MXU matmul (contraction depth K*Cin*W), f32 accumulation.
    y = jnp.dot(lhs_ref[...], w_ref[...], preferred_element_type=jnp.float32)
    y = y + b_ref[...]                          # bias, once per block
    y = jnp.where(y >= 0.0, y, NEG_SLOPE * y)   # LeakyReLU(0.2), once per block
    o_ref[...] = y.reshape(o_ref.shape).astype(o_ref.dtype)   # single lane-dense store


def _spectral_normalize(w_bar, u, v, power_iterations=1, eps=1e-12):
    """PyTorch custom SpectralNorm._update_u_v (dim=0, height=Cin): w_bar / sigma.

    Returns (w_sn, u_new, v_new) so callers can carry the power-iteration state.
    """
    height = w_bar.shape[0]
    w_mat = w_bar.reshape(height, -1)

    def l2n(a):
        return a / (jnp.linalg.norm(a) + eps)

    for _ in range(power_iterations):
        v = l2n(w_mat.T @ u)
        u = l2n(w_mat @ v)
    sigma = u @ (w_mat @ v)
    return w_bar / sigma, u, v


def _toeplitz_weight(w_sn, W, pad=1):
    """(Cin, Cout, K, K) conv_transpose weight -> (K, Cin, W, W*Cout) Toeplitz weight.

    w_big[dy, ci, xi, w*Cout+co] = wk[dy, xi-w+pad, ci, co] if 0 <= xi-w+pad < K else 0,
    where wk is the equivalent plain-conv kernel (flipped, cin/cout swapped).
    """
    Cin, Cout = w_sn.shape[0], w_sn.shape[1]
    wk = jnp.flip(w_sn, axis=(2, 3)).transpose(2, 3, 0, 1)     # (K, K, Cin, Cout)
    xi = jnp.arange(W)[:, None]                                # input column index
    wo = jnp.arange(W)[None, :]                                # output column index
    dx = xi - wo + pad                                         # (W, W) tap index
    valid = (dx >= 0) & (dx < K)
    dx_c = jnp.clip(dx, 0, K - 1)
    w_g = wk[:, dx_c, :, :]                                    # (K, W, W, Cin, Cout)
    w_g = jnp.where(valid[None, :, :, None, None], w_g, 0.0)
    # -> (dy, ci, xi, w, co) -> (K, Cin, W, W*Cout)
    return w_g.transpose(0, 3, 1, 2, 4).reshape(K, Cin, W, W * Cout)


def compare_gan_tconv2d(x_nchw, w_bar, bias, u, v, *, paddingmode="symmetric",
                        power_iterations=1, out_layout="NCHW", return_uv=False):
    """Forward pass of CompareGAN_TConv2d (stride=1, padding=1, output_padding=0).

    out_layout: "NCHW" (PyTorch parity, extra transpose) or "NHWC" (skips the
    HBM round-trip of the transpose — preferred when the consumer can fuse it).
    """
    # --- ZeroPad2d (only active for 'Asymmetric': (left,right,top,bottom)=(0,1,0,1)) ---
    if paddingmode == "Asymmetric":
        x_nchw = jnp.pad(x_nchw, ((0, 0), (0, 0), (0, 1), (0, 1)))

    N, Cin, H, W = x_nchw.shape
    Cout = w_bar.shape[1]

    # --- spectral norm of the ConvTranspose2d weight (cin, cout, K, K) ---
    w_sn, u_new, v_new = _spectral_normalize(w_bar, u, v, power_iterations)

    # --- Toeplitz-expanded conv weight (x-taps folded in) + tiled bias ---
    w_big = (_toeplitz_weight(w_sn, W, pad=1)
             .reshape(K * Cin * W, W * Cout).astype(jnp.bfloat16))
    b_tiled = jnp.tile(bias, W).reshape(1, W * Cout).astype(jnp.float32)

    # --- pre-pad the 1-pixel y-halo (x-halo folded into w_big); bf16 MXU operands ---
    x_pad = jnp.pad(x_nchw, ((0, 0), (0, 0), (1, 1), (0, 0))).astype(jnp.bfloat16)

    # --- batch Bt images per grid step so the matmul M-dim approaches 128 ---
    Bt = min(N, max(1, -(-128 // H)))
    while N % Bt:
        Bt -= 1
    grid = (N // Bt,)

    out_slab = pl.pallas_call(
        _tconv_lrelu_kernel,
        out_shape=jax.ShapeDtypeStruct((N, H, W * Cout), x_nchw.dtype),
        grid_spec=pltpu.PrefetchScalarGridSpec(
            num_scalar_prefetch=0,
            grid=grid,
            in_specs=[
                pl.BlockSpec((Bt, Cin, H + 2, W), lambda n: (n, 0, 0, 0)),
                pl.BlockSpec((K * Cin * W, W * Cout), lambda n: (0, 0)),
                pl.BlockSpec((1, W * Cout), lambda n: (0, 0)),
            ],
            out_specs=pl.BlockSpec((Bt, H, W * Cout), lambda n: (n, 0, 0)),
            scratch_shapes=[pltpu.VMEM((Bt * H, K * Cin * W), jnp.bfloat16)],
        ),
        compiler_params=pltpu.CompilerParams(dimension_semantics=("parallel",)),
    )(x_pad, w_big, b_tiled)

    if out_layout == "NHWC":
        out = out_slab.reshape(N, H, W, Cout)                       # no transpose
    else:
        out = out_slab.reshape(N, H, W, Cout).transpose(0, 3, 1, 2)  # NCHW (PyTorch)

    if return_uv:
        return out, (u_new, v_new)
    return out


def _reference(x_nchw, w_bar, bias, u, v):
    """Pure-JAX f32 reference (plain conv with the transformed kernel) for sanity."""
    w_sn, _, _ = _spectral_normalize(w_bar, u, v)
    w_c = jnp.flip(w_sn, axis=(2, 3)).transpose(1, 0, 2, 3)  # (cout, cin, K, K), OIHW
    y = jax.lax.conv_general_dilated(
        x_nchw, w_c, window_strides=(1, 1), padding=((1, 1), (1, 1)),
        dimension_numbers=("NCHW", "OIHW", "NCHW"))
    y = y + bias[None, :, None, None]
    return jnp.where(y >= 0, y, NEG_SLOPE * y)


if __name__ == "__main__":
    # Small shapes consistent with the module: batch=2, cin=4, cout=8, spatial=16.
    N, CIN, COUT, H, W = 2, 4, 8, 16, 16

    key = jax.random.PRNGKey(0)
    kx, kw, kb, ku, kv = jax.random.split(key, 5)

    x = jax.random.normal(kx, (N, CIN, H, W), dtype=jnp.float32)
    # ConvTranspose2d weight: (cin, cout, K, K); deterministic synthetic init.
    w_bar = 0.02 * jax.random.normal(kw, (CIN, COUT, K, K), dtype=jnp.float32)
    bias = 0.01 * jax.random.normal(kb, (COUT,), dtype=jnp.float32)
    # SpectralNorm u/v init: N(0,1) then l2-normalized (as in _make_params).
    u = jax.random.normal(ku, (CIN,), dtype=jnp.float32)
    v = jax.random.normal(kv, (COUT * K * K,), dtype=jnp.float32)
    u = u / (jnp.linalg.norm(u) + 1e-12)
    v = v / (jnp.linalg.norm(v) + 1e-12)

    out = compare_gan_tconv2d(x, w_bar, bias, u, v)
    out = jax.block_until_ready(out)

    ref = jax.block_until_ready(_reference(x, w_bar, bias, u, v))
    assert out.shape == (N, COUT, H, W), out.shape
    # bf16 MXU operands (f32 accumulation) -> loosened tolerance vs. the f32 reference.
    assert jnp.allclose(out, ref, atol=3e-2, rtol=3e-2), float(jnp.abs(out - ref).max())

    print("KERNEL_OK")
</pallas_src>

<mosaic_0001>
module attributes {stable_mosaic.version = 11 : i64} {
  func.func @_tconv_lrelu_kernel(%arg0: i32, %arg1: memref<2x4x18x16xbf16, #tpu.memory_space<vmem>>, %arg2: memref<192x128xbf16, #tpu.memory_space<vmem>>, %arg3: memref<1x128xf32, #tpu.memory_space<vmem>>, %arg4: memref<2x16x128xf32, #tpu.memory_space<vmem>>, %arg5: memref<32x192xbf16, #tpu.memory_space<vmem>>) attributes {dimension_semantics = [#tpu.dimension_semantics<parallel>], iteration_bounds = array<i64: 1>, scalar_prefetch = 0 : i64, scratch_operands = 1 : i64, tpu.core_type = #tpu.core_type<tc>, window_params = [{transform_indices = @transform_0, window_bounds = array<i64: 2, 4, 18, 16>}, {pipeline_mode = #tpu.pipeline_mode<synchronous>, transform_indices = @transform_1, window_bounds = array<i64: 192, 128>}, {pipeline_mode = #tpu.pipeline_mode<synchronous>, transform_indices = @transform_2, window_bounds = array<i64: 1, 128>}, {transform_indices = @transform_3, window_bounds = array<i64: 2, 16, 128>}]} {
    %c0 = arith.constant 0 : index
    %c0_0 = arith.constant 0 : index
    %c0_1 = arith.constant 0 : index
    %c0_2 = arith.constant 0 : index
    %0 = vector.load %arg1[%c0, %c0_0, %c0_1, %c0_2] : memref<2x4x18x16xbf16, #tpu.memory_space<vmem>>, vector<1x1x16x16xbf16>
    %1 = vector.shape_cast %0 : vector<1x1x16x16xbf16> to vector<16x16xbf16>
    %c0_3 = arith.constant 0 : index
    %c0_4 = arith.constant 0 : index
    %2 = vector.load %arg5[%c0_3, %c0_4] : memref<32x192xbf16, #tpu.memory_space<vmem>>, vector<16x16xbf16>
    tpu.vector_store %arg5[%c0_3, %c0_4], %1 {strides = array<i32>} : memref<32x192xbf16, #tpu.memory_space<vmem>>, vector<16x16xbf16>,
    %c0_5 = arith.constant 0 : index
    %c1 = arith.constant 1 : index
    %c0_6 = arith.constant 0 : index
    %c0_7 = arith.constant 0 : index
    %3 = vector.load %arg1[%c0_5, %c1, %c0_6, %c0_7] : memref<2x4x18x16xbf16, #tpu.memory_space<vmem>>, vector<1x1x16x16xbf16>
    %4 = vector.shape_cast %3 : vector<1x1x16x16xbf16> to vector<16x16xbf16>
    %c0_8 = arith.constant 0 : index
    %c16 = arith.constant 16 : index
    %5 = vector.load %arg5[%c0_8, %c16] : memref<32x192xbf16, #tpu.memory_space<vmem>>, vector<16x16xbf16>
    tpu.vector_store %arg5[%c0_8, %c16], %4 {strides = array<i32>} : memref<32x192xbf16, #tpu.memory_space<vmem>>, vector<16x16xbf16>,
    %c0_9 = arith.constant 0 : index
    %c2 = arith.constant 2 : index
    %c0_10 = arith.constant 0 : index
    %c0_11 = arith.constant 0 : index
    %6 = vector.load %arg1[%c0_9, %c2, %c0_10, %c0_11] : memref<2x4x18x16xbf16, #tpu.memory_space<vmem>>, vector<1x1x16x16xbf16>
    %7 = vector.shape_cast %6 : vector<1x1x16x16xbf16> to vector<16x16xbf16>
    %c0_12 = arith.constant 0 : index
    %c32 = arith.constant 32 : index
    %8 = vector.load %arg5[%c0_12, %c32] : memref<32x192xbf16, #tpu.memory_space<vmem>>, vector<16x16xbf16>
    tpu.vector_store %arg5[%c0_12, %c32], %7 {strides = array<i32>} : memref<32x192xbf16, #tpu.memory_space<vmem>>, vector<16x16xbf16>,
    %c0_13 = arith.constant 0 : index
    %c3 = arith.constant 3 : index
    %c0_14 = arith.constant 0 : index
    %c0_15 = arith.constant 0 : index
    %9 = vector.load %arg1[%c0_13, %c3, %c0_14, %c0_15] : memref<2x4x18x16xbf16, #tpu.memory_space<vmem>>, vector<1x1x16x16xbf16>
    %10 = vector.shape_cast %9 : vector<1x1x16x16xbf16> to vector<16x16xbf16>
    %c0_16 = arith.constant 0 : index
    %c48 = arith.constant 48 : index
    %11 = vector.load %arg5[%c0_16, %c48] : memref<32x192xbf16, #tpu.memory_space<vmem>>, vector<16x16xbf16>
    tpu.vector_store %arg5[%c0_16, %c48], %10 {strides = array<i32>} : memref<32x192xbf16, #tpu.memory_space<vmem>>, vector<16x16xbf16>,
    %c0_17 = arith.constant 0 : index
    %c0_18 = arith.constant 0 : index
    %c1_19 = arith.constant 1 : index
    %c0_20 = arith.constant 0 : index
    %12 = vector.load %arg1[%c0_17, %c0_18, %c1_19, %c0_20] : memref<2x4x18x16xbf16, #tpu.memory_space<vmem>>, vector<1x1x16x16xbf16>
    %13 = vector.shape_cast %12 : vector<1x1x16x16xbf16> to vector<16x16xbf16>
    %c0_21 = arith.constant 0 : index
    %c64 = arith.constant 64 : index
    %14 = vector.load %arg5[%c0_21, %c64] : memref<32x192xbf16, #tpu.memory_space<vmem>>, vector<16x16xbf16>
    tpu.vector_store %arg5[%c0_21, %c64], %13 {strides = array<i32>} : memref<32x192xbf16, #tpu.memory_space<vmem>>, vector<16x16xbf16>,
    %c0_22 = arith.constant 0 : index
    %c1_23 = arith.constant 1 : index
    %c1_24 = arith.constant 1 : index
    %c0_25 = arith.constant 0 : index
    %15 = vector.load %arg1[%c0_22, %c1_23, %c1_24, %c0_25] : memref<2x4x18x16xbf16, #tpu.memory_space<vmem>>, vector<1x1x16x16xbf16>
    %16 = vector.shape_cast %15 : vector<1x1x16x16xbf16> to vector<16x16xbf16>
    %c0_26 = arith.constant 0 : index
    %c80 = arith.constant 80 : index
    %17 = vector.load %arg5[%c0_26, %c80] : memref<32x192xbf16, #tpu.memory_space<vmem>>, vector<16x16xbf16>
    tpu.vector_store %arg5[%c0_26, %c80], %16 {strides = array<i32>} : memref<32x192xbf16, #tpu.memory_space<vmem>>, vector<16x16xbf16>,
    %c0_27 = arith.constant 0 : index
    %c2_28 = arith.constant 2 : index
    %c1_29 = arith.constant 1 : index
    %c0_30 = arith.constant 0 : index
    %18 = vector.load %arg1[%c0_27, %c2_28, %c1_29, %c0_30] : memref<2x4x18x16xbf16, #tpu.memory_space<vmem>>, vector<1x1x16x16xbf16>
    %19 = vector.shape_cast %18 : vector<1x1x16x16xbf16> to vector<16x16xbf16>
    %c0_31 = arith.constant 0 : index
    %c96 = arith.constant 96 : index
    %20 = vector.load %arg5[%c0_31, %c96] : memref<32x192xbf16, #tpu.memory_space<vmem>>, vector<16x16xbf16>
    tpu.vector_store %arg5[%c0_31, %c96], %19 {strides = array<i32>} : memref<32x192xbf16, #tpu.memory_space<vmem>>, vector<16x16xbf16>,
    %c0_32 = arith.constant 0 : index
    %c3_33 = arith.constant 3 : index
    %c1_34 = arith.constant 1 : index
    %c0_35 = arith.constant 0 : index
    %21 = vector.load %arg1[%c0_32, %c3_33, %c1_34, %c0_35] : memref<2x4x18x16xbf16, #tpu.memory_space<vmem>>, vector<1x1x16x16xbf16>
    %22 = vector.shape_cast %21 : vector<1x1x16x16xbf16> to vector<16x16xbf16>
    %c0_36 = arith.constant 0 : index
    %c112 = arith.constant 112 : index
    %23 = vector.load %arg5[%c0_36, %c112] : memref<32x192xbf16, #tpu.memory_space<vmem>>, vector<16x16xbf16>
    tpu.vector_store %arg5[%c0_36, %c112], %22 {strides = array<i32>} : memref<32x192xbf16, #tpu.memory_space<vmem>>, vector<16x16xbf16>,
    %c0_37 = arith.constant 0 : index
    %c0_38 = arith.constant 0 : index
    %c2_39 = arith.constant 2 : index
    %c0_40 = arith.constant 0 : index
    %24 = vector.load %arg1[%c0_37, %c0_38, %c2_39, %c0_40] : memref<2x4x18x16xbf16, #tpu.memory_space<vmem>>, vector<1x1x16x16xbf16>
    %25 = vector.shape_cast %24 : vector<1x1x16x16xbf16> to vector<16x16xbf16>
    %c0_41 = arith.constant 0 : index
    %c128 = arith.constant 128 : index
    %26 = vector.load %arg5[%c0_41, %c128] : memref<32x192xbf16, #tpu.memory_space<vmem>>, vector<16x16xbf16>
    tpu.vector_store %arg5[%c0_41, %c128], %25 {strides = array<i32>} : memref<32x192xbf16, #tpu.memory_space<vmem>>, vector<16x16xbf16>,
    %c0_42 = arith.constant 0 : index
    %c1_43 = arith.constant 1 : index
    %c2_44 = arith.constant 2 : index
    %c0_45 = arith.constant 0 : index
    %27 = vector.load %arg1[%c0_42, %c1_43, %c2_44, %c0_45] : memref<2x4x18x16xbf16, #tpu.memory_space<vmem>>, vector<1x1x16x16xbf16>
    %28 = vector.shape_cast %27 : vector<1x1x16x16xbf16> to vector<16x16xbf16>
    %c0_46 = arith.constant 0 : index
    %c144 = arith.constant 144 : index
    %29 = vector.load %arg5[%c0_46, %c144] : memref<32x192xbf16, #tpu.memory_space<vmem>>, vector<16x16xbf16>
    tpu.vector_store %arg5[%c0_46, %c144], %28 {strides = array<i32>} : memref<32x192xbf16, #tpu.memory_space<vmem>>, vector<16x16xbf16>,
    %c0_47 = arith.constant 0 : index
    %c2_48 = arith.constant 2 : index
    %c2_49 = arith.constant 2 : index
    %c0_50 = arith.constant 0 : index
    %30 = vector.load %arg1[%c0_47, %c2_48, %c2_49, %c0_50] : memref<2x4x18x16xbf16, #tpu.memory_space<vmem>>, vector<1x1x16x16xbf16>
    %31 = vector.shape_cast %30 : vector<1x1x16x16xbf16> to vector<16x16xbf16>
    %c0_51 = arith.constant 0 : index
    %c160 = arith.constant 160 : index
    %32 = vector.load %arg5[%c0_51, %c160] : memref<32x192xbf16, #tpu.memory_space<vmem>>, vector<16x16xbf16>
    tpu.vector_store %arg5[%c0_51, %c160], %31 {strides = array<i32>} : memref<32x192xbf16, #tpu.memory_space<vmem>>, vector<16x16xbf16>,
    %c0_52 = arith.constant 0 : index
    %c3_53 = arith.constant 3 : index
    %c2_54 = arith.constant 2 : index
    %c0_55 = arith.constant 0 : index
    %33 = vector.load %arg1[%c0_52, %c3_53, %c2_54, %c0_55] : memref<2x4x18x16xbf16, #tpu.memory_space<vmem>>, vector<1x1x16x16xbf16>
    %34 = vector.shape_cast %33 : vector<1x1x16x16xbf16> to vector<16x16xbf16>
    %c0_56 = arith.constant 0 : index
    %c176 = arith.constant 176 : index
    %35 = vector.load %arg5[%c0_56, %c176] : memref<32x192xbf16, #tpu.memory_space<vmem>>, vector<16x16xbf16>
    tpu.vector_store %arg5[%c0_56, %c176], %34 {strides = array<i32>} : memref<32x192xbf16, #tpu.memory_space<vmem>>, vector<16x16xbf16>,
    %c1_57 = arith.constant 1 : index
    %c0_58 = arith.constant 0 : index
    %c0_59 = arith.constant 0 : index
    %c0_60 = arith.constant 0 : index
    %36 = vector.load %arg1[%c1_57, %c0_58, %c0_59, %c0_60] : memref<2x4x18x16xbf16, #tpu.memory_space<vmem>>, vector<1x1x16x16xbf16>
    %37 = vector.shape_cast %36 : vector<1x1x16x16xbf16> to vector<16x16xbf16>
    %c16_61 = arith.constant 16 : index
    %c0_62 = arith.constant 0 : index
    %38 = vector.load %arg5[%c16_61, %c0_62] : memref<32x192xbf16, #tpu.memory_space<vmem>>, vector<16x16xbf16>
    tpu.vector_store %arg5[%c16_61, %c0_62], %37 {strides = array<i32>} : memref<32x192xbf16, #tpu.memory_space<vmem>>, vector<16x16xbf16>,
    %c1_63 = arith.constant 1 : index
    %c1_64 = arith.constant 1 : index
    %c0_65 = arith.constant 0 : index
    %c0_66 = arith.constant 0 : index
    %39 = vector.load %arg1[%c1_63, %c1_64, %c0_65, %c0_66] : memref<2x4x18x16xbf16, #tpu.memory_space<vmem>>, vector<1x1x16x16xbf16>
    %40 = vector.shape_cast %39 : vector<1x1x16x16xbf16> to vector<16x16xbf16>
    %c16_67 = arith.constant 16 : index
    %c16_68 = arith.constant 16 : index
    %41 = vector.load %arg5[%c16_67, %c16_68] : memref<32x192xbf16, #tpu.memory_space<vmem>>, vector<16x16xbf16>
    tpu.vector_store %arg5[%c16_67, %c16_68], %40 {strides = array<i32>} : memref<32x192xbf16, #tpu.memory_space<vmem>>, vector<16x16xbf16>,
    %c1_69 = arith.constant 1 : index
    %c2_70 = arith.constant 2 : index
    %c0_71 = arith.constant 0 : index
    %c0_72 = arith.constant 0 : index
    %42 = vector.load %arg1[%c1_69, %c2_70, %c0_71, %c0_72] : memref<2x4x18x16xbf16, #tpu.memory_space<vmem>>, vector<1x1x16x16xbf16>
    %43 = vector.shape_cast %42 : vector<1x1x16x16xbf16> to vector<16x16xbf16>
    %c16_73 = arith.constant 16 : index
    %c32_74 = arith.constant 32 : index
    %44 = vector.load %arg5[%c16_73, %c32_74] : memref<32x192xbf16, #tpu.memory_space<vmem>>, vector<16x16xbf16>
    tpu.vector_store %arg5[%c16_73, %c32_74], %43 {strides = array<i32>} : memref<32x192xbf16, #tpu.memory_space<vmem>>, vector<16x16xbf16>,
    %c1_75 = arith.constant 1 : index
    %c3_76 = arith.constant 3 : index
    %c0_77 = arith.constant 0 : index
    %c0_78 = arith.constant 0 : index
    %45 = vector.load %arg1[%c1_75, %c3_76, %c0_77, %c0_78] : memref<2x4x18x16xbf16, #tpu.memory_space<vmem>>, vector<1x1x16x16xbf16>
    %46 = vector.shape_cast %45 : vector<1x1x16x16xbf16> to vector<16x16xbf16>
    %c16_79 = arith.constant 16 : index
    %c48_80 = arith.constant 48 : index
    %47 = vector.load %arg5[%c16_79, %c48_80] : memref<32x192xbf16, #tpu.memory_space<vmem>>, vector<16x16xbf16>
    tpu.vector_store %arg5[%c16_79, %c48_80], %46 {strides = array<i32>} : memref<32x192xbf16, #tpu.memory_space<vmem>>, vector<16x16xbf16>,
    %c1_81 = arith.constant 1 : index
    %c0_82 = arith.constant 0 : index
    %c1_83 = arith.constant 1 : index
    %c0_84 = arith.constant 0 : index
    %48 = vector.load %arg1[%c1_81, %c0_82, %c1_83, %c0_84] : memref<2x4x18x16xbf16, #tpu.memory_space<vmem>>, vector<1x1x16x16xbf16>
    %49 = vector.shape_cast %48 : vector<1x1x16x16xbf16> to vector<16x16xbf16>
    %c16_85 = arith.constant 16 : index
    %c64_86 = arith.constant 64 : index
    %50 = vector.load %arg5[%c16_85, %c64_86] : memref<32x192xbf16, #tpu.memory_space<vmem>>, vector<16x16xbf16>
    tpu.vector_store %arg5[%c16_85, %c64_86], %49 {strides = array<i32>} : memref<32x192xbf16, #tpu.memory_space<vmem>>, vector<16x16xbf16>,
    %c1_87 = arith.constant 1 : index
    %c1_88 = arith.constant 1 : index
    %c1_89 = arith.constant 1 : index
    %c0_90 = arith.constant 0 : index
    %51 = vector.load %arg1[%c1_87, %c1_88, %c1_89, %c0_90] : memref<2x4x18x16xbf16, #tpu.memory_space<vmem>>, vector<1x1x16x16xbf16>
    %52 = vector.shape_cast %51 : vector<1x1x16x16xbf16> to vector<16x16xbf16>
    %c16_91 = arith.constant 16 : index
    %c80_92 = arith.constant 80 : index
    %53 = vector.load %arg5[%c16_91, %c80_92] : memref<32x192xbf16, #tpu.memory_space<vmem>>, vector<16x16xbf16>
    tpu.vector_store %arg5[%c16_91, %c80_92], %52 {strides = array<i32>} : memref<32x192xbf16, #tpu.memory_space<vmem>>, vector<16x16xbf16>,
    %c1_93 = arith.constant 1 : index
    %c2_94 = arith.constant 2 : index
    %c1_95 = arith.constant 1 : index
    %c0_96 = arith.constant 0 : index
    %54 = vector.load %arg1[%c1_93, %c2_94, %c1_95, %c0_96] : memref<2x4x18x16xbf16, #tpu.memory_space<vmem>>, vector<1x1x16x16xbf16>
    %55 = vector.shape_cast %54 : vector<1x1x16x16xbf16> to vector<16x16xbf16>
    %c16_97 = arith.constant 16 : index
    %c96_98 = arith.constant 96 : index
    %56 = vector.load %arg5[%c16_97, %c96_98] : memref<32x192xbf16, #tpu.memory_space<vmem>>, vector<16x16xbf16>
    tpu.vector_store %arg5[%c16_97, %c96_98], %55 {strides = array<i32>} : memref<32x192xbf16, #tpu.memory_space<vmem>>, vector<16x16xbf16>,
    %c1_99 = arith.constant 1 : index
    %c3_100 = arith.constant 3 : index
    %c1_101 = arith.constant 1 : index
    %c0_102 = arith.constant 0 : index
    %57 = vector.load %arg1[%c1_99, %c3_100, %c1_101, %c0_102] : memref<2x4x18x16xbf16, #tpu.memory_space<vmem>>, vector<1x1x16x16xbf16>
    %58 = vector.shape_cast %57 : vector<1x1x16x16xbf16> to vector<16x16xbf16>
    %c16_103 = arith.constant 16 : index
    %c112_104 = arith.constant 112 : index
    %59 = vector.load %arg5[%c16_103, %c112_104] : memref<32x192xbf16, #tpu.memory_space<vmem>>, vector<16x16xbf16>
    tpu.vector_store %arg5[%c16_103, %c112_104], %58 {strides = array<i32>} : memref<32x192xbf16, #tpu.memory_space<vmem>>, vector<16x16xbf16>,
    %c1_105 = arith.constant 1 : index
    %c0_106 = arith.constant 0 : index
    %c2_107 = arith.constant 2 : index
    %c0_108 = arith.constant 0 : index
    %60 = vector.load %arg1[%c1_105, %c0_106, %c2_107, %c0_108] : memref<2x4x18x16xbf16, #tpu.memory_space<vmem>>, vector<1x1x16x16xbf16>
    %61 = vector.shape_cast %60 : vector<1x1x16x16xbf16> to vector<16x16xbf16>
    %c16_109 = arith.constant 16 : index
    %c128_110 = arith.constant 128 : index
    %62 = vector.load %arg5[%c16_109, %c128_110] : memref<32x192xbf16, #tpu.memory_space<vmem>>, vector<16x16xbf16>
    tpu.vector_store %arg5[%c16_109, %c128_110], %61 {strides = array<i32>} : memref<32x192xbf16, #tpu.memory_space<vmem>>, vector<16x16xbf16>,
    %c1_111 = arith.constant 1 : index
    %c1_112 = arith.constant 1 : index
    %c2_113 = arith.constant 2 : index
    %c0_114 = arith.constant 0 : index
    %63 = vector.load %arg1[%c1_111, %c1_112, %c2_113, %c0_114] : memref<2x4x18x16xbf16, #tpu.memory_space<vmem>>, vector<1x1x16x16xbf16>
    %64 = vector.shape_cast %63 : vector<1x1x16x16xbf16> to vector<16x16xbf16>
    %c16_115 = arith.constant 16 : index
    %c144_116 = arith.constant 144 : index
    %65 = vector.load %arg5[%c16_115, %c144_116] : memref<32x192xbf16, #tpu.memory_space<vmem>>, vector<16x16xbf16>
    tpu.vector_store %arg5[%c16_115, %c144_116], %64 {strides = array<i32>} : memref<32x192xbf16, #tpu.memory_space<vmem>>, vector<16x16xbf16>,
    %c1_117 = arith.constant 1 : index
    %c2_118 = arith.constant 2 : index
    %c2_119 = arith.constant 2 : index
    %c0_120 = arith.constant 0 : index
    %66 = vector.load %arg1[%c1_117, %c2_118, %c2_119, %c0_120] : memref<2x4x18x16xbf16, #tpu.memory_space<vmem>>, vector<1x1x16x16xbf16>
    %67 = vector.shape_cast %66 : vector<1x1x16x16xbf16> to vector<16x16xbf16>
    %c16_121 = arith.constant 16 : index
    %c160_122 = arith.constant 160 : index
    %68 = vector.load %arg5[%c16_121, %c160_122] : memref<32x192xbf16, #tpu.memory_space<vmem>>, vector<16x16xbf16>
    tpu.vector_store %arg5[%c16_121, %c160_122], %67 {strides = array<i32>} : memref<32x192xbf16, #tpu.memory_space<vmem>>, vector<16x16xbf16>,
    %c1_123 = arith.constant 1 : index
    %c3_124 = arith.constant 3 : index
    %c2_125 = arith.constant 2 : index
    %c0_126 = arith.constant 0 : index
    %69 = vector.load %arg1[%c1_123, %c3_124, %c2_125, %c0_126] : memref<2x4x18x16xbf16, #tpu.memory_space<vmem>>, vector<1x1x16x16xbf16>
    %70 = vector.shape_cast %69 : vector<1x1x16x16xbf16> to vector<16x16xbf16>
    %c16_127 = arith.constant 16 : index
    %c176_128 = arith.constant 176 : index
    %71 = vector.load %arg5[%c16_127, %c176_128] : memref<32x192xbf16, #tpu.memory_space<vmem>>, vector<16x16xbf16>
    tpu.vector_store %arg5[%c16_127, %c176_128], %70 {strides = array<i32>} : memref<32x192xbf16, #tpu.memory_space<vmem>>, vector<16x16xbf16>,
    %c0_129 = arith.constant 0 : index
    %c0_130 = arith.constant 0 : index
    %72 = vector.load %arg5[%c0_129, %c0_130] : memref<32x192xbf16, #tpu.memory_space<vmem>>, vector<32x192xbf16>
    %c0_131 = arith.constant 0 : index
    %c0_132 = arith.constant 0 : index
    %73 = vector.load %arg2[%c0_131, %c0_132] : memref<192x128xbf16, #tpu.memory_space<vmem>>, vector<192x128xbf16>
    %cst = arith.constant dense<0.000000e+00> : vector<32x128xf32>
    %74 = tpu.matmul %72, %73, %cst {dimension_numbers = #tpu.dot_dimension_numbers<[1], [0], [0], [1], [0, 0, 1, 1], [], []>} : vector<32x192xbf16>, vector<192x128xbf16>, vector<32x128xf32> -> vector<32x128xf32>
    %c0_133 = arith.constant 0 : index
    %c0_134 = arith.constant 0 : index
    %75 = vector.load %arg3[%c0_133, %c0_134] : memref<1x128xf32, #tpu.memory_space<vmem>>, vector<1x128xf32>
    %76 = vector.broadcast %75 : vector<1x128xf32> to vector<32x128xf32>
    %77 = arith.addf %74, %76 : vector<32x128xf32>
    %cst_135 = arith.constant 0.000000e+00 : f32
    %78 = vector.broadcast %cst_135 : f32 to vector<32x128xf32>
    %79 = arith.cmpf oge, %77, %78 : vector<32x128xf32>
    %cst_136 = arith.constant 2.000000e-01 : f32
    %80 = vector.broadcast %cst_136 : f32 to vector<32x128xf32>
    %81 = arith.mulf %80, %77 : vector<32x128xf32>
    %82 = arith.select %79, %77, %81 : vector<32x128xi1>, vector<32x128xf32>
    %83 = vector.shape_cast %82 : vector<32x128xf32> to vector<2x16x128xf32>
    %c0_137 = arith.constant 0 : index
    %c0_138 = arith.constant 0 : index
    %c0_139 = arith.constant 0 : index
    %84 = vector.load %arg4[%c0_137, %c0_138, %c0_139] : memref<2x16x128xf32, #tpu.memory_space<vmem>>, vector<2x16x128xf32>
    tpu.vector_store %arg4[%c0_137, %c0_138, %c0_139], %83 {strides = array<i32>} : memref<2x16x128xf32, #tpu.memory_space<vmem>>, vector<2x16x128xf32>,
    return
  }
  func.func @transform_0(%arg0: i32) -> (i32, i32, i32, i32) {
    %c0_i32 = arith.constant 0 : i32
    %c0_i32_0 = arith.constant 0 : i32
    %c0_i32_1 = arith.constant 0 : i32
    %c0_i32_2 = arith.constant 0 : i32
    return %arg0, %c0_i32, %c0_i32_0, %c0_i32_1 : i32, i32, i32, i32
  }
  func.func @transform_1(%arg0: i32) -> (i32, i32) {
    %c0_i32 = arith.constant 0 : i32
    %c0_i32_0 = arith.constant 0 : i32
    %c0_i32_1 = arith.constant 0 : i32
    return %c0_i32, %c0_i32_0 : i32, i32
  }
  func.func @transform_2(%arg0: i32) -> (i32, i32) {
    %c0_i32 = arith.constant 0 : i32
    %c0_i32_0 = arith.constant 0 : i32
    %c0_i32_1 = arith.constant 0 : i32
    return %c0_i32, %c0_i32_0 : i32, i32
  }
  func.func @transform_3(%arg0: i32) -> (i32, i32, i32) {
    %c0_i32 = arith.constant 0 : i32
    %c0_i32_0 = arith.constant 0 : i32
    %c0_i32_1 = arith.constant 0 : i32
    return %arg0, %c0_i32, %c0_i32_0 : i32, i32, i32
  }
}

</mosaic_0001>

<llo_original>
// kernel: tpu_custom_call.1
$region0: #{tpu_custom_call.1}
  #allocation0 [shape = 'u32[]', space=smem, size = 0x4, offset = 0x4, fixed_abs, tag = 'smem constant byte address 0x4 - core index']
  #allocation1 [shape = 'u32[144,128]{1,0:T(1,128)}', space=vmem, size = 0x12000, scoped, tag = 'internal scratch']
  #allocation2 [shape = 'bf16[32,192]{1,0:T(16,128)(2,1)}', space=vmem, size = 0x4000, scoped, tag = 'scratch operand']
  %s0 = inlined_call_operand.vmem [shape: bf16[2,4,18,16], index: 0, kind: input, shape index: {}]
  %s1 = inlined_call_operand.vmem [shape: bf16[192,128], index: 1, kind: input, shape index: {}]
  %s2 = inlined_call_operand.vmem [shape: f32[1,128], index: 2, kind: input, shape index: {}]
  %s3 = inlined_call_operand.hbm [shape: f32[2,16,128], index: 3, kind: output, shape index: {}]
  %s4 = sld [smem:[#allocation0]]
  $region22: #{tpu_custom_call.1} parent=0
    _
  %s6 = ssub.s32 1, %s4
  %s7 = scalar_select 0, %s6, %s4
  $region1: #{tpu_custom_call.1} parent=0
    #allocation3 [shape = 'u8[16384]{0}', space=vmem, size = 0x4000, scoped, tag = 'output window, operand 0, single buffered']
    #allocation4 [shape = 's32[1]{0}', space=sflag, size = 0x4, scoped, tag = 'scoped memory for tpu_custom_call.1']
    %8 = vsyncpa [#allocation4], 0
    // Predicated region
    $region2: #{tpu_custom_call.1} parent=1 // pred_check
      _
    $region3: #{tpu_custom_call.1} parent=1 // pred_check_branch
      %10 = sbr.rel (0) target = $region5
    $region4: #{tpu_custom_call.1} parent=1 // pred_region
      _
    $region5: #{tpu_custom_call.1} parent=1 // pred_fallthru
      _
    // Predicated region
    $region6: #{tpu_custom_call.1} parent=1 // pred_check
      _
    $region7: #{tpu_custom_call.1} parent=1 // pred_check_branch
      %12 = sbr.rel (0) target = $region9
    $region8: #{tpu_custom_call.1} parent=1 // pred_region
      _
    $region9: #{tpu_custom_call.1} parent=1 // pred_fallthru
      _
    // Predicated region
    $region10: #{tpu_custom_call.1} parent=1 // pred_check
      _
    $region11: #{tpu_custom_call.1} parent=1 // pred_check_branch
      %14 = sbr.rel (0) target = $region13
    $region12: #{tpu_custom_call.1} parent=1 // pred_region
      _
    $region13: #{tpu_custom_call.1} parent=1 // pred_fallthru
      _
    %v16 = vld [vmem:[%s0] sm:$0xf]
    %v17 = vld [vmem:[%s0 + $0x4] sm:$0xf]
    %v20 = vunpack.c.l.b16 %v16
    %v21 = vunpack.c.l.b16 %v17
    %v22 = vpack.c.b16 %v21, %v20
    %vm24 = vcmask 130048
    %25 = vst.msk [vmem:[#allocation2] sm:$0xff] %vm24, %v22
    %s26 = scalar_lea.vmem %s0, 12
    %v27 = vld [vmem:[%s26] sm:$0xf]
    %v28 = vld [vmem:[%s26 + $0x4] sm:$0xf]
    %v31 = vunpack.c.l.b16 %v27
    %v32 = vunpack.c.l.b16 %v28
    %v33 = vpack.c.b16 %v32, %v31
    %34 = vrot.lane.b32.xlu0 %v33, 16
    %v35 = vpop.permute.xlu0 %34
    %vm37 = vcmask 261248
    %38 = vst.msk [vmem:[#allocation2] sm:$0xff] %vm37, %v35
    %s39 = scalar_lea.vmem %s0, 24
    %v40 = vld [vmem:[%s39] sm:$0xf]
    %v41 = vld [vmem:[%s39 + $0x4] sm:$0xf]
    %v44 = vunpack.c.l.b16 %v40
    %v45 = vunpack.c.l.b16 %v41
    %v46 = vpack.c.b16 %v45, %v44
    %47 = vrot.lane.b32.xlu0 %v46, 32
    %v48 = vpop.permute.xlu0 %47
    %vm50 = vcmask 392448
    %51 = vst.msk [vmem:[#allocation2] sm:$0xff] %vm50, %v48
    %s52 = scalar_lea.vmem %s0, 36
    %v53 = vld [vmem:[%s52] sm:$0xf]
    %v54 = vld [vmem:[%s52 + $0x4] sm:$0xf]
    %v57 = vunpack.c.l.b16 %v53
    %v58 = vunpack.c.l.b16 %v54
    %v59 = vpack.c.b16 %v58, %v57
    %60 = vrot.lane.b32.xlu0 %v59, 48
    %v61 = vpop.permute.xlu0 %60
    %vm63 = vcmask 523648
    %64 = vst.msk [vmem:[#allocation2] sm:$0xff] %vm63, %v61
    %v65 = vld [vmem:[%s0] sm:$0xf]
    %v66 = vld [vmem:[%s0 + $0x4] sm:$0xf]
    %v67 = vld [vmem:[%s0 + $0x8] sm:$0x1]
    %v71 = vunpack.c.l.b16 %v65
    %v72 = vunpack.c.l.b16 %v66
    %v73 = vunpack.c.l.b16 %v67
    %v74 = vpack.c.b16 %v72, %v71
    %v75 = vpack.c.b16 %v73, %v73
    %vm76 = vsmask.f32 7424
    %v78 = vshrl.u32 %v74, 16
    %v80 = vshll.u32 %v74, 16
    %v82 = vrot.slane %v80, 1
    %v83 = vor.u32 %v78, %v82
    %v85 = vshll.u32 %v75, 16
    %v87 = vrot.slane %v85, 1
    %v88 = vsel %vm76, %v83, %v87
    %89 = vrot.lane.b32.xlu0 %v88, 64
    %v90 = vpop.permute.xlu0 %89
    %vm92 = vcmask 654848
    %93 = vst.msk [vmem:[#allocation2] sm:$0xff] %vm92, %v90
    %v94 = vld [vmem:[%s26] sm:$0xf]
    %v95 = vld [vmem:[%s26 + $0x4] sm:$0xf]
    %v96 = vld [vmem:[%s26 + $0x8] sm:$0x1]
    %v100 = vunpack.c.l.b16 %v94
    %v101 = vunpack.c.l.b16 %v95
    %v102 = vunpack.c.l.b16 %v96
    %v103 = vpack.c.b16 %v101, %v100
    %v104 = vpack.c.b16 %v102, %v102
    %v106 = vshrl.u32 %v103, 16
    %v108 = vshll.u32 %v103, 16
    %v110 = vrot.slane %v108, 1
    %v111 = vor.u32 %v106, %v110
    %v113 = vshll.u32 %v104, 16
    %v115 = vrot.slane %v113, 1
    %v116 = vsel %vm76, %v111, %v115
    %117 = vrot.lane.b32.xlu0 %v116, 80
    %v118 = vpop.permute.xlu0 %117
    %vm120 = vcmask 786048
    %121 = vst.msk [vmem:[#allocation2] sm:$0xff] %vm120, %v118
    %v122 = vld [vmem:[%s39] sm:$0xf]
    %v123 = vld [vmem:[%s39 + $0x4] sm:$0xf]
    %v124 = vld [vmem:[%s39 + $0x8] sm:$0x1]
    %v128 = vunpack.c.l.b16 %v122
    %v129 = vunpack.c.l.b16 %v123
    %v130 = vunpack.c.l.b16 %v124
    %v131 = vpack.c.b16 %v129, %v128
    %v132 = vpack.c.b16 %v130, %v130
    %v134 = vshrl.u32 %v131, 16
    %v136 = vshll.u32 %v131, 16
    %v138 = vrot.slane %v136, 1
    %v139 = vor.u32 %v134, %v138
    %v141 = vshll.u32 %v132, 16
    %v143 = vrot.slane %v141, 1
    %v144 = vsel %vm76, %v139, %v143
    %145 = vrot.lane.b32.xlu0 %v144, 96
    %v146 = vpop.permute.xlu0 %145
    %vm148 = vcmask 917248
    %149 = vst.msk [vmem:[#allocation2] sm:$0xff] %vm148, %v146
    %v150 = vld [vmem:[%s52] sm:$0xf]
    %v151 = vld [vmem:[%s52 + $0x4] sm:$0xf]
    %v152 = vld [vmem:[%s52 + $0x8] sm:$0x1]
    %v156 = vunpack.c.l.b16 %v150
    %v157 = vunpack.c.l.b16 %v151
    %v158 = vunpack.c.l.b16 %v152
    %v159 = vpack.c.b16 %v157, %v156
    %v160 = vpack.c.b16 %v158, %v158
    %v162 = vshrl.u32 %v159, 16
    %v164 = vshll.u32 %v159, 16
    %v166 = vrot.slane %v164, 1
    %v167 = vor.u32 %v162, %v166
    %v169 = vshll.u32 %v160, 16
    %v171 = vrot.slane %v169, 1
    %v172 = vsel %vm76, %v167, %v171
    %173 = vrot.lane.b32.xlu0 %v172, 112
    %v174 = vpop.permute.xlu0 %173
    %vm176 = vcmask 1048448
    %177 = vst.msk [vmem:[#allocation2] sm:$0xff] %vm176, %v174
    %v178 = vld [vmem:[%s0] sm:$0xe]
    %v179 = vld [vmem:[%s0 + $0x4] sm:$0xf]
    %v180 = vld [vmem:[%s0 + $0x8] sm:$0x1]
    %v184 = vunpack.c.l.b16 %v178
    %v185 = vunpack.c.l.b16 %v179
    %v186 = vunpack.c.l.b16 %v180
    %v187 = vpack.c.b16 %v185, %v184
    %v188 = vpack.c.b16 %v186, %v186
    %vm189 = vcmask 1046528
    %v190 = vrot.slane %v187, 1
    %v191 = vrot.slane %v188, 1
    %v192 = vsel %vm189, %v190, %v191
    %194 = vst.msk [vmem:[#allocation2 + $0x8] sm:$0xff] %vm24, %v192
    %v195 = vld [vmem:[%s26] sm:$0xe]
    %v196 = vld [vmem:[%s26 + $0x4] sm:$0xf]
    %v197 = vld [vmem:[%s26 + $0x8] sm:$0x1]
    %v201 = vunpack.c.l.b16 %v195
    %v202 = vunpack.c.l.b16 %v196
    %v203 = vunpack.c.l.b16 %v197
    %v204 = vpack.c.b16 %v202, %v201
    %v205 = vpack.c.b16 %v203, %v203
    %v206 = vrot.slane %v204, 1
    %v207 = vrot.slane %v205, 1
    %v208 = vsel %vm189, %v206, %v207
    %209 = vrot.lane.b32.xlu0 %v208, 16
    %v210 = vpop.permute.xlu0 %209
    %212 = vst.msk [vmem:[#allocation2 + $0x8] sm:$0xff] %vm37, %v210
    %v213 = vld [vmem:[%s39] sm:$0xe]
    %v214 = vld [vmem:[%s39 + $0x4] sm:$0xf]
    %v215 = vld [vmem:[%s39 + $0x8] sm:$0x1]
    %v219 = vunpack.c.l.b16 %v213
    %v220 = vunpack.c.l.b16 %v214
    %v221 = vunpack.c.l.b16 %v215
    %v222 = vpack.c.b16 %v220, %v219
    %v223 = vpack.c.b16 %v221, %v221
    %v224 = vrot.slane %v222, 1
    %v225 = vrot.slane %v223, 1
    %v226 = vsel %vm189, %v224, %v225
    %227 = vrot.lane.b32.xlu0 %v226, 32
    %v228 = vpop.permute.xlu0 %227
    %230 = vst.msk [vmem:[#allocation2 + $0x8] sm:$0xff] %vm50, %v228
    %v231 = vld [vmem:[%s52] sm:$0xe]
    %v232 = vld [vmem:[%s52 + $0x4] sm:$0xf]
    %v233 = vld [vmem:[%s52 + $0x8] sm:$0x1]
    %v237 = vunpack.c.l.b16 %v231
    %v238 = vunpack.c.l.b16 %v232
    %v239 = vunpack.c.l.b16 %v233
    %v240 = vpack.c.b16 %v238, %v237
    %v241 = vpack.c.b16 %v239, %v239
    %v242 = vrot.slane %v240, 1
    %v243 = vrot.slane %v241, 1
    %v244 = vsel %vm189, %v242, %v243
    %245 = vrot.lane.b32.xlu0 %v244, 48
    %v246 = vpop.permute.xlu0 %245
    %248 = vst.msk [vmem:[#allocation2 + $0x8] sm:$0xff] %vm63, %v246
    %s249 = scalar_lea.vmem %s0, 48
    %v250 = vld [vmem:[%s249] sm:$0xf]
    %v251 = vld [vmem:[%s249 + $0x4] sm:$0xf]
    %v254 = vunpack.c.l.b16 %v250
    %v255 = vunpack.c.l.b16 %v251
    %v256 = vpack.c.b16 %v255, %v254
    %258 = vst.msk [vmem:[#allocation2 + $0x10] sm:$0xff] %vm24, %v256
    %s259 = scalar_lea.vmem %s0, 60
    %v260 = vld [vmem:[%s259] sm:$0xf]
    %v261 = vld [vmem:[%s259 + $0x4] sm:$0xf]
    %v264 = vunpack.c.l.b16 %v260
    %v265 = vunpack.c.l.b16 %v261
    %v266 = vpack.c.b16 %v265, %v264
    %267 = vrot.lane.b32.xlu0 %v266, 16
    %v268 = vpop.permute.xlu0 %267
    %270 = vst.msk [vmem:[#allocation2 + $0x10] sm:$0xff] %vm37, %v268
    %s271 = scalar_lea.vmem %s0, 72
    %v272 = vld [vmem:[%s271] sm:$0xf]
    %v273 = vld [vmem:[%s271 + $0x4] sm:$0xf]
    %v276 = vunpack.c.l.b16 %v272
    %v277 = vunpack.c.l.b16 %v273
    %v278 = vpack.c.b16 %v277, %v276
    %279 = vrot.lane.b32.xlu0 %v278, 32
    %v280 = vpop.permute.xlu0 %279
    %282 = vst.msk [vmem:[#allocation2 + $0x10] sm:$0xff] %vm50, %v280
    %s283 = scalar_lea.vmem %s0, 84
    %v284 = vld [vmem:[%s283] sm:$0xf]
    %v285 = vld [vmem:[%s283 + $0x4] sm:$0xf]
    %v288 = vunpack.c.l.b16 %v284
    %v289 = vunpack.c.l.b16 %v285
    %v290 = vpack.c.b16 %v289, %v288
    %291 = vrot.lane.b32.xlu0 %v290, 48
    %v292 = vpop.permute.xlu0 %291
    %294 = vst.msk [vmem:[#allocation2 + $0x10] sm:$0xff] %vm63, %v292
    %v295 = vld [vmem:[%s249] sm:$0xf]
    %v296 = vld [vmem:[%s249 + $0x4] sm:$0xf]
    %v297 = vld [vmem:[%s249 + $0x8] sm:$0x1]
    %v301 = vunpack.c.l.b16 %v295
    %v302 = vunpack.c.l.b16 %v296
    %v303 = vunpack.c.l.b16 %v297
    %v304 = vpack.c.b16 %v302, %v301
    %v305 = vpack.c.b16 %v303, %v303
    %v307 = vshrl.u32 %v304, 16
    %v309 = vshll.u32 %v304, 16
    %v311 = vrot.slane %v309, 1
    %v312 = vor.u32 %v307, %v311
    %v314 = vshll.u32 %v305, 16
    %v316 = vrot.slane %v314, 1
    %v317 = vsel %vm76, %v312, %v316
    %318 = vrot.lane.b32.xlu0 %v317, 64
    %v319 = vpop.permute.xlu0 %318
    %321 = vst.msk [vmem:[#allocation2 + $0x10] sm:$0xff] %vm92, %v319
    %v322 = vld [vmem:[%s259] sm:$0xf]
    %v323 = vld [vmem:[%s259 + $0x4] sm:$0xf]
    %v324 = vld [vmem:[%s259 + $0x8] sm:$0x1]
    %v328 = vunpack.c.l.b16 %v322
    %v329 = vunpack.c.l.b16 %v323
    %v330 = vunpack.c.l.b16 %v324
    %v331 = vpack.c.b16 %v329, %v328
    %v332 = vpack.c.b16 %v330, %v330
    %v334 = vshrl.u32 %v331, 16
    %v336 = vshll.u32 %v331, 16
    %v338 = vrot.slane %v336, 1
    %v339 = vor.u32 %v334, %v338
    %v341 = vshll.u32 %v332, 16
    %v343 = vrot.slane %v341, 1
    %v344 = vsel %vm76, %v339, %v343
    %345 = vrot.lane.b32.xlu0 %v344, 80
    %v346 = vpop.permute.xlu0 %345
    %348 = vst.msk [vmem:[#allocation2 + $0x10] sm:$0xff] %vm120, %v346
    %v349 = vld [vmem:[%s271] sm:$0xf]
    %v350 = vld [vmem:[%s271 + $0x4] sm:$0xf]
    %v351 = vld [vmem:[%s271 + $0x8] sm:$0x1]
    %v355 = vunpack.c.l.b16 %v349
    %v356 = vunpack.c.l.b16 %v350
    %v357 = vunpack.c.l.b16 %v351
    %v358 = vpack.c.b16 %v356, %v355
    %v359 = vpack.c.b16 %v357, %v357
    %v361 = vshrl.u32 %v358, 16
    %v363 = vshll.u32 %v358, 16
    %v365 = vrot.slane %v363, 1
    %v366 = vor.u32 %v361, %v365
    %v368 = vshll.u32 %v359, 16
    %v370 = vrot.slane %v368, 1
    %v371 = vsel %vm76, %v366, %v370
    %372 = vrot.lane.b32.xlu0 %v371, 96
    %v373 = vpop.permute.xlu0 %372
    %375 = vst.msk [vmem:[#allocation2 + $0x10] sm:$0xff] %vm148, %v373
    %v376 = vld [vmem:[%s283] sm:$0xf]
    %v377 = vld [vmem:[%s283 + $0x4] sm:$0xf]
    %v378 = vld [vmem:[%s283 + $0x8] sm:$0x1]
    %v382 = vunpack.c.l.b16 %v376
    %v383 = vunpack.c.l.b16 %v377
    %v384 = vunpack.c.l.b16 %v378
    %v385 = vpack.c.b16 %v383, %v382
    %v386 = vpack.c.b16 %v384, %v384
    %v388 = vshrl.u32 %v385, 16
    %v390 = vshll.u32 %v385, 16
    %v392 = vrot.slane %v390, 1
    %v393 = vor.u32 %v388, %v392
    %v395 = vshll.u32 %v386, 16
    %v397 = vrot.slane %v395, 1
    %v398 = vsel %vm76, %v393, %v397
    %399 = vrot.lane.b32.xlu0 %v398, 112
    %v400 = vpop.permute.xlu0 %399
    %402 = vst.msk [vmem:[#allocation2 + $0x10] sm:$0xff] %vm176, %v400
    %v403 = vld [vmem:[%s249] sm:$0xe]
    %v404 = vld [vmem:[%s249 + $0x4] sm:$0xf]
    %v405 = vld [vmem:[%s249 + $0x8] sm:$0x1]
    %v409 = vunpack.c.l.b16 %v403
    %v410 = vunpack.c.l.b16 %v404
    %v411 = vunpack.c.l.b16 %v405
    %v412 = vpack.c.b16 %v410, %v409
    %v413 = vpack.c.b16 %v411, %v411
    %v414 = vrot.slane %v412, 1
    %v415 = vrot.slane %v413, 1
    %v416 = vsel %vm189, %v414, %v415
    %418 = vst.msk [vmem:[#allocation2 + $0x18] sm:$0xff] %vm24, %v416
    %v419 = vld [vmem:[%s259] sm:$0xe]
    %v420 = vld [vmem:[%s259 + $0x4] sm:$0xf]
    %v421 = vld [vmem:[%s259 + $0x8] sm:$0x1]
    %v425 = vunpack.c.l.b16 %v419
    %v426 = vunpack.c.l.b16 %v420
    %v427 = vunpack.c.l.b16 %v421
    %v428 = vpack.c.b16 %v426, %v425
    %v429 = vpack.c.b16 %v427, %v427
    %v430 = vrot.slane %v428, 1
    %v431 = vrot.slane %v429, 1
    %v432 = vsel %vm189, %v430, %v431
    %433 = vrot.lane.b32.xlu0 %v432, 16
    %v434 = vpop.permute.xlu0 %433
    %436 = vst.msk [vmem:[#allocation2 + $0x18] sm:$0xff] %vm37, %v434
    %v437 = vld [vmem:[%s271] sm:$0xe]
    %v438 = vld [vmem:[%s271 + $0x4] sm:$0xf]
    %v439 = vld [vmem:[%s271 + $0x8] sm:$0x1]
    %v443 = vunpack.c.l.b16 %v437
    %v444 = vunpack.c.l.b16 %v438
    %v445 = vunpack.c.l.b16 %v439
    %v446 = vpack.c.b16 %v444, %v443
    %v447 = vpack.c.b16 %v445, %v445
    %v448 = vrot.slane %v446, 1
    %v449 = vrot.slane %v447, 1
    %v450 = vsel %vm189, %v448, %v449
    %451 = vrot.lane.b32.xlu0 %v450, 32
    %v452 = vpop.permute.xlu0 %451
    %454 = vst.msk [vmem:[#allocation2 + $0x18] sm:$0xff] %vm50, %v452
    %v455 = vld [vmem:[%s283] sm:$0xe]
    %v456 = vld [vmem:[%s283 + $0x4] sm:$0xf]
    %v457 = vld [vmem:[%s283 + $0x8] sm:$0x1]
    %v461 = vunpack.c.l.b16 %v455
    %v462 = vunpack.c.l.b16 %v456
    %v463 = vunpack.c.l.b16 %v457
    %v464 = vpack.c.b16 %v462, %v461
    %v465 = vpack.c.b16 %v463, %v463
    %v466 = vrot.slane %v464, 1
    %v467 = vrot.slane %v465, 1
    %v468 = vsel %vm189, %v466, %v467
    %469 = vrot.lane.b32.xlu0 %v468, 48
    %v470 = vpop.permute.xlu0 %469
    %472 = vst.msk [vmem:[#allocation2 + $0x18] sm:$0xff] %vm63, %v470
    %v473 = vld [vmem:[#allocation2] sm:$0xff]
    %v474 = vld [vmem:[#allocation2 + $0x8] sm:$0xff]
    %v475 = vld [vmem:[#allocation2 + $0x10] sm:$0xff]
    %v476 = vld [vmem:[#allocation2 + $0x18] sm:$0xff]
    %v477 = vld [vmem:[%s1] sm:$0xf]
    %v478 = vld [vmem:[%s1 + $0x4] sm:$0xf]
    %v479 = vld [vmem:[%s1 + $0x8] sm:$0xf]
    %v480 = vld [vmem:[%s1 + $0xc] sm:$0xf]
    %v481 = vld [vmem:[%s1 + $0x10] sm:$0xf]
    %v482 = vld [vmem:[%s1 + $0x14] sm:$0xf]
    %v483 = vld [vmem:[%s1 + $0x18] sm:$0xf]
    %v484 = vld [vmem:[%s1 + $0x1c] sm:$0xf]
    %v485 = vld [vmem:[%s1 + $0x20] sm:$0xf]
    %v486 = vld [vmem:[%s1 + $0x24] sm:$0xf]
    %v487 = vld [vmem:[%s1 + $0x28] sm:$0xf]
    %v488 = vld [vmem:[%s1 + $0x2c] sm:$0xf]
    %v489 = vld [vmem:[%s1 + $0x30] sm:$0xf]
    %v490 = vld [vmem:[%s1 + $0x34] sm:$0xf]
    %v491 = vld [vmem:[%s1 + $0x38] sm:$0xf]
    %v492 = vld [vmem:[%s1 + $0x3c] sm:$0xf]
    %v493 = vld [vmem:[%s1 + $0x40] sm:$0xf]
    %v494 = vld [vmem:[%s1 + $0x44] sm:$0xf]
    %v495 = vld [vmem:[%s1 + $0x48] sm:$0xf]
    %v496 = vld [vmem:[%s1 + $0x4c] sm:$0xf]
    %v497 = vld [vmem:[%s1 + $0x50] sm:$0xf]
    %v498 = vld [vmem:[%s1 + $0x54] sm:$0xf]
    %v499 = vld [vmem:[%s1 + $0x58] sm:$0xf]
    %v500 = vld [vmem:[%s1 + $0x5c] sm:$0xf]
    %v501 = vld [vmem:[%s2] sm:$0x1]
    %v503 = vlaneseq
    %v504 = vshrl.u32 %v503, 7
    %v505 = vsub.s32 0, %v504
    %v506 = vrot.slane %v501, %v505
    %v532 = vunpack.c.l.b16 %v477
    %v533 = vunpack.c.l.b16 %v478
    %v534 = vunpack.c.l.b16 %v479
    %v535 = vunpack.c.l.b16 %v480
    %v536 = vunpack.c.l.b16 %v481
    %v537 = vunpack.c.l.b16 %v482
    %v538 = vunpack.c.l.b16 %v483
    %v539 = vunpack.c.l.b16 %v484
    %v540 = vunpack.c.l.b16 %v485
    %v541 = vunpack.c.l.b16 %v486
    %v542 = vunpack.c.l.b16 %v487
    %v543 = vunpack.c.l.b16 %v488
    %v544 = vunpack.c.l.b16 %v489
    %v545 = vunpack.c.l.b16 %v490
    %v546 = vunpack.c.l.b16 %v491
    %v547 = vunpack.c.l.b16 %v492
    %v548 = vunpack.c.l.b16 %v493
    %v549 = vunpack.c.l.b16 %v494
    %v550 = vunpack.c.l.b16 %v495
    %v551 = vunpack.c.l.b16 %v496
    %v552 = vunpack.c.l.b16 %v497
    %v553 = vunpack.c.l.b16 %v498
    %v554 = vunpack.c.l.b16 %v499
    %v555 = vunpack.c.l.b16 %v500
    %v556 = vpack.c.b16 %v533, %v532
    %v557 = vpack.c.b16 %v535, %v534
    %v558 = vpack.c.b16 %v537, %v536
    %v559 = vpack.c.b16 %v539, %v538
    %v560 = vpack.c.b16 %v541, %v540
    %v561 = vpack.c.b16 %v543, %v542
    %v562 = vpack.c.b16 %v545, %v544
    %v563 = vpack.c.b16 %v547, %v546
    %v564 = vpack.c.b16 %v549, %v548
    %v565 = vpack.c.b16 %v551, %v550
    %v566 = vpack.c.b16 %v553, %v552
    %v567 = vpack.c.b16 %v555, %v554
    %vm580 = vcmask 523264
    %v582 = vsel %vm580, %v474, 0
    %v585 = vsel %vm580, %v476, 0
    %587 = vmatprep.subr.bf16.mxu0 0
    %588 = vmatpush1.bf16.msra.mxu0 %v556
    %589 = vmatprep.subr.bf16.mxu0 0
    %590 = vmatpush1.bf16.msra.mxu0 %v557
    %591 = vmatprep.subr.bf16.mxu0 0
    %592 = vmatpush1.bf16.msra.mxu0 %v558
    %593 = vmatprep.subr.bf16.mxu0 0
    %594 = vmatpush1.bf16.msra.mxu0 %v559
    %595 = vmatprep.subr.bf16.mxu0 0
    %596 = vmatpush1.bf16.msra.mxu0 %v560
    %597 = vmatprep.subr.bf16.mxu0 0
    %598 = vmatpush1.bf16.msra.mxu0 %v561
    %599 = vmatprep.subr.bf16.mxu0 0
    %600 = vmatpush1.bf16.msra.mxu0 %v562
    %601 = vmatprep.subr.bf16.mxu0 0
    %602 = vmatpush1.bf16.msra.mxu0 %v563
    %603 = vmatprep.subr.bf16.mxu0 0
    %604 = vmatpush1.bf16.msra.mxu0 %v564
    %605 = vmatprep.subr.bf16.mxu0 0
    %606 = vmatpush1.bf16.msra.mxu0 %v565
    %607 = vmatprep.subr.bf16.mxu0 0
    %608 = vmatpush1.bf16.msra.mxu0 %v566
    %609 = vmatprep.subr.bf16.mxu0 0
    %610 = vmatpush1.bf16.msra.mxu0 %v567
    %611 = vmatprep.subr.bf16.mxu0 0
    %612 = vmatpush1.bf16.msra.mxu0 0
    %613 = vmatprep.subr.bf16.mxu0 0
    %614 = vmatpush1.bf16.msra.mxu0 0
    %615 = vmatprep.subr.bf16.mxu0 0
    %616 = vmatpush1.bf16.msra.mxu0 0
    %617 = vmatprep.subr.bf16.mxu0 0
    %618 = vmatpush1.bf16.msra.mxu0 0
    %619 = vmatprep.mubr.bf16.mxu0 %v582
    %620 = vmatmul.mubr.bf16.gmra.mrb[0].mxu0 %v473
    %v621 = vpop.f32.mrb[0].mxu0
    %v622 = vadd.f32 %v506, %v621
    %v623 = vpop.f32.mrb[0].mxu0
    %v624 = vpop.f32.mrb[0].mxu0
    %v625 = vadd.f32 %v506, %v624
    %v626 = vpop.f32.mrb[0].mxu0
    %627 = vmatprep.mubr.bf16.mxu0 %v585
    %628 = vmatmul.mubr.bf16.gmra.mrb[0].mxu0 %v475
    %v629 = vpop.f32.mrb[0].mxu0
    %v630 = vadd.f32 %v506, %v629
    %v631 = vpop.f32.mrb[0].mxu0
    %v632 = vpop.f32.mrb[0].mxu0
    %v633 = vadd.f32 %v506, %v632
    %v634 = vpop.f32.mrb[0].mxu0
    %635 = vdwg.mxu0
    %vm636 = vcmp.ge.f32.partialorder %v622, 0.0
    %vm637 = vcmp.ge.f32.partialorder %v625, 0.0
    %vm638 = vcmp.ge.f32.partialorder %v630, 0.0
    %vm639 = vcmp.ge.f32.partialorder %v633, 0.0
    %v640 = vmul.f32 %v622, 0.2
    %v641 = vmul.f32 %v625, 0.2
    %v642 = vmul.f32 %v630, 0.2
    %v643 = vmul.f32 %v633, 0.2
    %v644 = vsel %vm636, %v622, %v640
    %v645 = vsel %vm637, %v625, %v641
    %v646 = vsel %vm638, %v630, %v642
    %v647 = vsel %vm639, %v633, %v643
    %648 = vst [vmem:[#allocation3] sm:$0xff] %v644
    %649 = vst [vmem:[#allocation3 + $0x8] sm:$0xff] %v645
    %650 = vst [vmem:[#allocation3 + $0x10] sm:$0xff] %v646
    %651 = vst [vmem:[#allocation3 + $0x18] sm:$0xff] %v647
    // Predicated region
    $region14: #{tpu_custom_call.1} parent=1 // pred_check
      _
    $region15: #{tpu_custom_call.1} parent=1 // pred_check_branch
      %653 = sbr.rel (0) target = $region17
    $region16: #{tpu_custom_call.1} parent=1 // pred_region
      %s655 = ssub.s32 512, 512
      %656 = vsyncadd [#allocation4], %s655
      %s657 = sshll.u32 [#allocation3], 4
      %s658 = int_to_ptr.vmem [resolvable:$true] %s657
      %663 = dma.vmem_to_hbm [thread:$0]  %s658, 512, %s3, [#allocation4], 128, 128, 8
    $region17: #{tpu_custom_call.1} parent=1 // pred_fallthru
      _
    // Predicated region
    $region18: #{tpu_custom_call.1} parent=1 // pred_check
      _
    $region19: #{tpu_custom_call.1} parent=1 // pred_check_branch
      %665 = sbr.rel (0) target = $region21
    $region20: #{tpu_custom_call.1} parent=1 // pred_region
      %666 = dma.done [#allocation4], 512
    $region21: #{tpu_custom_call.1} parent=1 // pred_fallthru
      _
    %667 = vsyncpa [#allocation4], 1

</llo_original>
